<compile_context>
chip_gen: v7x
topology: tpu7x:2x2x1
jax: 0.10.0
libtpu: 0.0.40
codegen_flags: <defaults>
</compile_context>

<pallas_src>
import jax
import jax.numpy as jnp
from jax.experimental import pallas as pl
from jax.experimental.pallas import tpu as pltpu


_LANES = 128                 # vreg lane width
_SUBLANES = 8                # vreg sublane height (f32)
_ALIGN = _LANES * _SUBLANES  # 1024: batch padding granularity


def _logreg_kernel(w_ref, b_ref, x_ref, o_ref):
    # w_ref: (F,)              f32 in SMEM (flattened PyTorch weight)
    # b_ref: (1,)              f32 in SMEM
    # x_ref: (F, tile_r, 128)  f32 in VMEM (batch = rows x lanes, dense vregs)
    # o_ref: (tile_r, 128)     f32 in VMEM (dense, unmasked stores)
    F = x_ref.shape[0]
    # K=5 / N=1 contraction as an F-term VPU MAC on full (8,128) slabs:
    # no MXU, no cross-lane reduction, scalar weights broadcast from SMEM.
    z = x_ref[0] * w_ref[0]
    for k in range(1, F):
        z = z + x_ref[k] * w_ref[k]
    z = z + b_ref[0]
    # sigmoid(z) = 0.5 * (tanh(z/2) + 1): a single EUP transcendental, no divide.
    o_ref[...] = 0.5 * (jnp.tanh(0.5 * z) + 1.0)


def logistic_regression_feature_major(x_fm, weight, bias, *, tile_rows=2048):
    """y = sigmoid(weight @ x_fm + bias) for feature-major input.

    x_fm: (F, B) f32, weight: (1, F) f32, bias: (1,) f32  ->  (B, 1) f32

    Fast path: when B is already a multiple of 1024 the only HBM traffic is
    the 20 B/sample read of x and the 4 B/sample write of y.
    """
    F, B = x_fm.shape
    assert weight.shape == (1, F)
    assert bias.shape == (1,)

    # Pad the batch only to a multiple of 1024 (8 sublanes x 128 lanes) so pad
    # traffic is at most 1023 samples, independent of the tile size.
    padded_b = pl.cdiv(B, _ALIGN) * _ALIGN
    x_fm = x_fm.astype(jnp.float32)
    if padded_b != B:
        x_fm = jnp.pad(x_fm, ((0, 0), (0, padded_b - B)))
    R = padded_b // _LANES                     # rows of 128 samples (multiple of 8)

    # Free, contiguous reshape: batch -> (rows, lanes) so every kernel
    # load/store is a dense (tile_r, 128) slab (full vregs, unmasked vst).
    x3 = x_fm.reshape(F, R, _LANES)

    # Tile selection: big tiles amortize per-step pipeline overhead, but keep
    # the grid at >= 2 tiles when the batch allows so both v7x TensorCores get
    # work from the "parallel" batch axis.
    tile_r = min(tile_rows, R)
    if R >= 2 * _SUBLANES:
        half = ((pl.cdiv(R, 2) + _SUBLANES - 1) // _SUBLANES) * _SUBLANES
        tile_r = min(tile_r, half)
    tile_r = max(_SUBLANES, (tile_r // _SUBLANES) * _SUBLANES)
    num_tiles = pl.cdiv(R, tile_r)             # ragged last tile is fine:
                                               # kernel is elementwise, pad
                                               # lanes are discarded below.

    w_flat = weight.reshape(F).astype(jnp.float32)
    b_flat = bias.astype(jnp.float32)

    # Working set at tile_r=2048: x block 5*2048*128*4 = 5.25 MiB, out block
    # 1.05 MiB; double-buffered ~12.6 MiB -> fits the 32 MiB scoped-VMEM
    # default on v5e/v6e/v7x (and v5e's 16 MiB default is covered by the
    # explicit limit below).
    out3 = pl.pallas_call(
        _logreg_kernel,
        out_shape=jax.ShapeDtypeStruct((R, _LANES), jnp.float32),
        grid=(num_tiles,),
        in_specs=[
            pl.BlockSpec(memory_space=pltpu.MemorySpace.SMEM),      # weight (F,)
            pl.BlockSpec(memory_space=pltpu.MemorySpace.SMEM),      # bias (1,)
            pl.BlockSpec((F, tile_r, _LANES), lambda i: (0, i, 0)),  # x tile
        ],
        out_specs=pl.BlockSpec((tile_r, _LANES), lambda i: (i, 0)),
        compiler_params=pltpu.CompilerParams(
            dimension_semantics=("parallel",),   # shard batch tiles across TCs (v7x)
            vmem_limit_bytes=32 * 1024 * 1024,   # at/below v7x scoped default
        ),
    )(w_flat, b_flat, x3)

    # (R, 128) -> (padded_b,) is a free contiguous reshape; slice drops pads.
    return out3.reshape(padded_b)[:B].reshape(B, 1)


def logistic_regression(x, weight, bias, *, tile_rows=2048):
    """PyTorch-shaped entry point: x (B, F) row-major -> y (B, 1).

    NOTE: the transpose below is one extra HBM read+write pass over x done by
    XLA in the wrapper. If the producer can emit feature-major (F, B)
    activations, call logistic_regression_feature_major directly and skip it.
    """
    B, F = x.shape
    return logistic_regression_feature_major(
        x.astype(jnp.float32).T, weight, bias, tile_rows=tile_rows)


if __name__ == "__main__":
    key = jax.random.PRNGKey(0)
    kx, kw, kb = jax.random.split(key, 3)

    # Small demo shapes consistent with the module; at tiny B the call is all
    # launch/DMA overhead — the kernel targets large B (HBM-bandwidth-bound).
    B, F = 8, 5
    x = jax.random.normal(kx, (B, F), dtype=jnp.float32)

    # Deterministic params, same scheme as torch.nn.Linear default init:
    # U(-1/sqrt(fan_in), 1/sqrt(fan_in)) with fan_in = 5.
    bound = 1.0 / jnp.sqrt(jnp.float32(F))
    weight = jax.random.uniform(kw, (1, F), jnp.float32, -bound, bound)
    bias = jax.random.uniform(kb, (1,), jnp.float32, -bound, bound)

    y = logistic_regression(x, weight, bias)
    jax.block_until_ready(y)

    # Cross-check against plain-JAX reference.
    y_ref = jax.nn.sigmoid(x @ weight.T + bias[None, :])
    assert y.shape == (B, 1)
    assert jnp.allclose(y, y_ref, atol=1e-5, rtol=1e-5), "mismatch vs reference"

    print("KERNEL_OK")
</pallas_src>

<mosaic_0001>
module attributes {stable_mosaic.version = 11 : i64} {
  func.func @_logreg_kernel(%arg0: i32, %arg1: memref<5xf32, #tpu.memory_space<smem>>, %arg2: memref<1xf32, #tpu.memory_space<smem>>, %arg3: memref<5x8x128xf32, #tpu.memory_space<vmem>>, %arg4: memref<8x128xf32, #tpu.memory_space<vmem>>) attributes {dimension_semantics = [#tpu.dimension_semantics<parallel>], iteration_bounds = array<i64: 1>, scalar_prefetch = 0 : i64, scratch_operands = 0 : i64, tpu.core_type = #tpu.core_type<tc>, window_params = [{transform_indices = @transform_0, window_bounds = array<i64: 5>}, {transform_indices = @transform_1, window_bounds = array<i64: 1>}, {transform_indices = @transform_2, window_bounds = array<i64: 5, 8, 128>}, {transform_indices = @transform_3, window_bounds = array<i64: 8, 128>}]} {
    %c0 = arith.constant 0 : index
    %c0_0 = arith.constant 0 : index
    %c0_1 = arith.constant 0 : index
    %0 = vector.load %arg3[%c0, %c0_0, %c0_1] : memref<5x8x128xf32, #tpu.memory_space<vmem>>, vector<1x8x128xf32>
    %1 = vector.shape_cast %0 : vector<1x8x128xf32> to vector<8x128xf32>
    %c0_2 = arith.constant 0 : index
    %2 = memref.load %arg1[%c0_2] : memref<5xf32, #tpu.memory_space<smem>>
    %3 = vector.broadcast %2 : f32 to vector<8x128xf32>
    %4 = arith.mulf %1, %3 : vector<8x128xf32>
    %c1 = arith.constant 1 : index
    %c0_3 = arith.constant 0 : index
    %c0_4 = arith.constant 0 : index
    %5 = vector.load %arg3[%c1, %c0_3, %c0_4] : memref<5x8x128xf32, #tpu.memory_space<vmem>>, vector<1x8x128xf32>
    %6 = vector.shape_cast %5 : vector<1x8x128xf32> to vector<8x128xf32>
    %c1_5 = arith.constant 1 : index
    %7 = memref.load %arg1[%c1_5] : memref<5xf32, #tpu.memory_space<smem>>
    %8 = vector.broadcast %7 : f32 to vector<8x128xf32>
    %9 = arith.mulf %6, %8 : vector<8x128xf32>
    %10 = arith.addf %4, %9 : vector<8x128xf32>
    %c2 = arith.constant 2 : index
    %c0_6 = arith.constant 0 : index
    %c0_7 = arith.constant 0 : index
    %11 = vector.load %arg3[%c2, %c0_6, %c0_7] : memref<5x8x128xf32, #tpu.memory_space<vmem>>, vector<1x8x128xf32>
    %12 = vector.shape_cast %11 : vector<1x8x128xf32> to vector<8x128xf32>
    %c2_8 = arith.constant 2 : index
    %13 = memref.load %arg1[%c2_8] : memref<5xf32, #tpu.memory_space<smem>>
    %14 = vector.broadcast %13 : f32 to vector<8x128xf32>
    %15 = arith.mulf %12, %14 : vector<8x128xf32>
    %16 = arith.addf %10, %15 : vector<8x128xf32>
    %c3 = arith.constant 3 : index
    %c0_9 = arith.constant 0 : index
    %c0_10 = arith.constant 0 : index
    %17 = vector.load %arg3[%c3, %c0_9, %c0_10] : memref<5x8x128xf32, #tpu.memory_space<vmem>>, vector<1x8x128xf32>
    %18 = vector.shape_cast %17 : vector<1x8x128xf32> to vector<8x128xf32>
    %c3_11 = arith.constant 3 : index
    %19 = memref.load %arg1[%c3_11] : memref<5xf32, #tpu.memory_space<smem>>
    %20 = vector.broadcast %19 : f32 to vector<8x128xf32>
    %21 = arith.mulf %18, %20 : vector<8x128xf32>
    %22 = arith.addf %16, %21 : vector<8x128xf32>
    %c4 = arith.constant 4 : index
    %c0_12 = arith.constant 0 : index
    %c0_13 = arith.constant 0 : index
    %23 = vector.load %arg3[%c4, %c0_12, %c0_13] : memref<5x8x128xf32, #tpu.memory_space<vmem>>, vector<1x8x128xf32>
    %24 = vector.shape_cast %23 : vector<1x8x128xf32> to vector<8x128xf32>
    %c4_14 = arith.constant 4 : index
    %25 = memref.load %arg1[%c4_14] : memref<5xf32, #tpu.memory_space<smem>>
    %26 = vector.broadcast %25 : f32 to vector<8x128xf32>
    %27 = arith.mulf %24, %26 : vector<8x128xf32>
    %28 = arith.addf %22, %27 : vector<8x128xf32>
    %c0_15 = arith.constant 0 : index
    %29 = memref.load %arg2[%c0_15] : memref<1xf32, #tpu.memory_space<smem>>
    %30 = vector.broadcast %29 : f32 to vector<8x128xf32>
    %31 = arith.addf %28, %30 : vector<8x128xf32>
    %cst = arith.constant 5.000000e-01 : f32
    %32 = vector.broadcast %cst : f32 to vector<8x128xf32>
    %33 = arith.mulf %32, %31 : vector<8x128xf32>
    %34 = math.tanh %33 : vector<8x128xf32>
    %cst_16 = arith.constant 1.000000e+00 : f32
    %35 = vector.broadcast %cst_16 : f32 to vector<8x128xf32>
    %36 = arith.addf %34, %35 : vector<8x128xf32>
    %cst_17 = arith.constant 5.000000e-01 : f32
    %37 = vector.broadcast %cst_17 : f32 to vector<8x128xf32>
    %38 = arith.mulf %37, %36 : vector<8x128xf32>
    %c0_18 = arith.constant 0 : index
    %c0_19 = arith.constant 0 : index
    %39 = vector.load %arg4[%c0_18, %c0_19] : memref<8x128xf32, #tpu.memory_space<vmem>>, vector<8x128xf32>
    tpu.vector_store %arg4[%c0_18, %c0_19], %38 {strides = array<i32>} : memref<8x128xf32, #tpu.memory_space<vmem>>, vector<8x128xf32>,
    return
  }
  func.func @transform_0(%arg0: i32) -> i32 {
    %c0_i32 = arith.constant 0 : i32
    %c0_i32_0 = arith.constant 0 : i32
    return %c0_i32 : i32
  }
  func.func @transform_1(%arg0: i32) -> i32 {
    %c0_i32 = arith.constant 0 : i32
    %c0_i32_0 = arith.constant 0 : i32
    return %c0_i32 : i32
  }
  func.func @transform_2(%arg0: i32) -> (i32, i32, i32) {
    %c0_i32 = arith.constant 0 : i32
    %c0_i32_0 = arith.constant 0 : i32
    %c0_i32_1 = arith.constant 0 : i32
    return %c0_i32, %arg0, %c0_i32_0 : i32, i32, i32
  }
  func.func @transform_3(%arg0: i32) -> (i32, i32) {
    %c0_i32 = arith.constant 0 : i32
    %c0_i32_0 = arith.constant 0 : i32
    return %arg0, %c0_i32 : i32, i32
  }
}

</mosaic_0001>

<llo_original>
// kernel: tpu_custom_call.1
$region0: #{tpu_custom_call.1}
  #allocation0 [shape = 'u32[]', space=smem, size = 0x4, offset = 0x4, fixed_abs, tag = 'smem constant byte address 0x4 - core index']
  #allocation1 [shape = 'u32[144,128]{1,0:T(1,128)}', space=vmem, size = 0x12000, scoped, tag = 'internal scratch']
  #allocation2 [shape = 'f32[1]{0:T(128)S(6)}', space=smem, size = 0x200, scoped, tag = 'scoped memory for tpu_custom_call.1']
  %s0 = inlined_call_operand.vmem [shape: f32[5], index: 0, kind: input, shape index: {}]
  %s1 = inlined_call_operand.<no memory space> [shape: f32[1], index: 1, kind: input, shape index: {}]
  %s2 = inlined_call_operand.hbm [shape: f32[5,8,128], index: 2, kind: input, shape index: {}]
  %s3 = inlined_call_operand.hbm [shape: f32[8,128], index: 3, kind: output, shape index: {}]
  %s4 = sld [smem:[#allocation0]]
  $region30: #{tpu_custom_call.1} parent=0
    _
  %s6 = ssub.s32 1, %s4
  %s7 = scalar_select 0, %s6, %s4
  %8 = sst [smem:[#allocation2]] %s1
  $region1: #{tpu_custom_call.1} parent=0
    #allocation3 [shape = 'u8[512]{0}', space=smem, size = 0x200, scoped, tag = 'input window, operand 0, single buffered']
    #allocation4 [shape = 's32[1]{0}', space=sflag, size = 0x4, scoped, tag = 'scoped memory for tpu_custom_call.1']
    #allocation5 [shape = 's32[1]{0}', space=sflag, size = 0x4, scoped, tag = 'scoped memory for tpu_custom_call.1']
    #allocation6 [shape = 's32[1]{0}', space=sflag, size = 0x4, scoped, tag = 'scoped memory for tpu_custom_call.1']
    #allocation7 [shape = 'u8[20480]{0}', space=vmem, size = 0x5000, scoped, tag = 'input window, operand 2, single buffered']
    #allocation8 [shape = 'u8[4096]{0}', space=vmem, size = 0x1000, scoped, tag = 'output window, operand 0, single buffered']
    %9 = vsyncpa [#allocation6], 0
    %10 = vsyncpa [#allocation4], 0
    %11 = vsyncpa [#allocation5], 0
    // Predicated region
    $region2: #{tpu_custom_call.1} parent=1 // pred_check
      _
    $region3: #{tpu_custom_call.1} parent=1 // pred_check_branch
      %13 = sbr.rel (0) target = $region5
    $region4: #{tpu_custom_call.1} parent=1 // pred_region
      %s15 = ssub.s32 16, 16
      %16 = vsyncadd [#allocation6], %s15
      %s18 = sshll.u32 %s0, 4
      %s19 = int_to_ptr.vmem [resolvable:$true] %s18
      %21 = dma.vmem_to_smem %s19, 16, [#allocation3], [#allocation6]
    $region5: #{tpu_custom_call.1} parent=1 // pred_fallthru
      _
    // Predicated region
    $region6: #{tpu_custom_call.1} parent=1 // pred_check
      _
    $region7: #{tpu_custom_call.1} parent=1 // pred_check_branch
      %23 = sbr.rel (0) target = $region9
    $region8: #{tpu_custom_call.1} parent=1 // pred_region
      _
    $region9: #{tpu_custom_call.1} parent=1 // pred_fallthru
      _
    // Predicated region
    $region10: #{tpu_custom_call.1} parent=1 // pred_check
      _
    $region11: #{tpu_custom_call.1} parent=1 // pred_check_branch
      %25 = sbr.rel (0) target = $region13
    $region12: #{tpu_custom_call.1} parent=1 // pred_region
      %s27 = ssub.s32 640, 640
      %28 = vsyncadd [#allocation4], %s27
      %s29 = sshll.u32 [#allocation7], 4
      %s30 = int_to_ptr.vmem [resolvable:$true] %s29
      %35 = dma.hbm_to_vmem [thread:$0]  %s2, 640, %s30, [#allocation4], 128, 128, 8
    $region13: #{tpu_custom_call.1} parent=1 // pred_fallthru
      _
    // Predicated region
    $region14: #{tpu_custom_call.1} parent=1 // pred_check
      _
    $region15: #{tpu_custom_call.1} parent=1 // pred_check_branch
      %37 = sbr.rel (0) target = $region17
    $region16: #{tpu_custom_call.1} parent=1 // pred_region
      %38 = dma.done [#allocation6], 16
    $region17: #{tpu_custom_call.1} parent=1 // pred_fallthru
      _
    // Predicated region
    $region18: #{tpu_custom_call.1} parent=1 // pred_check
      _
    $region19: #{tpu_custom_call.1} parent=1 // pred_check_branch
      %40 = sbr.rel (0) target = $region21
    $region20: #{tpu_custom_call.1} parent=1 // pred_region
      %41 = dma.done [#allocation4], 640
    $region21: #{tpu_custom_call.1} parent=1 // pred_fallthru
      _
    %42 = sfence
    %v43 = vld [vmem:[#allocation7] sm:$0xff]
    %s44 = sld [smem:[#allocation3]]
    %v45 = vstv %s44
    %v46 = vmul.f32 %v43, %v45
    %s47 = scalar_lea.vmem [#allocation7], 8
    %v48 = vld [vmem:[%s47] sm:$0xff]
    %s49 = sld [smem:[#allocation3 + $0x1]]
    %v50 = vstv %s49
    %v51 = vmul.f32 %v48, %v50
    %v52 = vadd.f32 %v46, %v51
    %s53 = scalar_lea.vmem [#allocation7], 16
    %v54 = vld [vmem:[%s53] sm:$0xff]
    %s55 = sld [smem:[#allocation3 + $0x2]]
    %v56 = vstv %s55
    %v57 = vmul.f32 %v54, %v56
    %v58 = vadd.f32 %v52, %v57
    %s59 = scalar_lea.vmem [#allocation7], 24
    %v60 = vld [vmem:[%s59] sm:$0xff]
    %s61 = sld [smem:[#allocation3 + $0x3]]
    %v62 = vstv %s61
    %v63 = vmul.f32 %v60, %v62
    %v64 = vadd.f32 %v58, %v63
    %s65 = scalar_lea.vmem [#allocation7], 32
    %v66 = vld [vmem:[%s65] sm:$0xff]
    %s67 = sld [smem:[#allocation3 + $0x4]]
    %v68 = vstv %s67
    %v69 = vmul.f32 %v66, %v68
    %v70 = vadd.f32 %v64, %v69
    %s71 = sld [smem:[#allocation2]]
    %v72 = vstv %s71
    %v73 = vadd.f32 %v70, %v72
    %v74 = vmul.f32 %v73, 0.5
    %v75 = vtanh.pop %v74
    %v76 = vadd.f32 %v75, 1.0
    %v77 = vmul.f32 %v76, 0.5
    %78 = vst [vmem:[#allocation8] sm:$0xff] %v77
    // Predicated region
    $region22: #{tpu_custom_call.1} parent=1 // pred_check
      _
    $region23: #{tpu_custom_call.1} parent=1 // pred_check_branch
      %80 = sbr.rel (0) target = $region25
    $region24: #{tpu_custom_call.1} parent=1 // pred_region
      %s82 = ssub.s32 128, 128
      %83 = vsyncadd [#allocation5], %s82
      %s85 = sshll.u32 [#allocation8], 4
      %s86 = int_to_ptr.vmem [resolvable:$true] %s85
      %88 = dma.vmem_to_hbm [thread:$0]  %s86, 128, %s3, [#allocation5]
    $region25: #{tpu_custom_call.1} parent=1 // pred_fallthru
      _
    // Predicated region
    $region26: #{tpu_custom_call.1} parent=1 // pred_check
      _
    $region27: #{tpu_custom_call.1} parent=1 // pred_check_branch
      %90 = sbr.rel (0) target = $region29
    $region28: #{tpu_custom_call.1} parent=1 // pred_region
      %91 = dma.done [#allocation5], 128
    $region29: #{tpu_custom_call.1} parent=1 // pred_fallthru
      _
    %92 = vsyncpa [#allocation4], 1
    %93 = vsyncpa [#allocation5], 1
    %94 = vsyncpa [#allocation6], 1

</llo_original>
